<compile_context>
chip_gen: v6e
topology: v6e:2x2x1
jax: 0.10.0
libtpu: 0.0.40
codegen_flags: <defaults>
</compile_context>

<pallas_src>
import jax
import jax.numpy as jnp
from jax.experimental import pallas as pl
from jax.experimental.pallas import tpu as pltpu


def linear_kernel(x_ref, w_ref, b_ref, o_ref):
    # x_ref: (TILE_B, in_features)   w_ref: (in_features, C)   b_ref: (1, C)
    # Pure VPU: unrolled multiply-add over the (tiny, static) contraction dim.
    in_features = x_ref.shape[1]
    acc = x_ref[:, 0:1] * w_ref[0:1, :]            # (TILE_B, C) via broadcast
    for k in range(1, in_features):
        acc = acc + x_ref[:, k:k + 1] * w_ref[k:k + 1, :]
    o_ref[...] = (acc + b_ref[...]).astype(o_ref.dtype)


def prepare_params(weight, bias):
    """One-time layout prep (PyTorch layout -> kernel layout).

    weight: (num_classes, in_features)  ->  (in_features, num_classes)
    bias:   (num_classes,)              ->  (1, num_classes)
    """
    return weight.T, bias.reshape(1, -1)


def simple_linear(x, w_t, b2d):
    """y = x @ w_t + b2d  (== PyTorch nn.Linear(x; weight, bias)).

    x:   (B, in_features) float32
    w_t: (in_features, num_classes)   -- pre-transposed weight
    b2d: (1, num_classes)             -- pre-reshaped bias
    """
    B, in_features = x.shape
    num_classes = w_t.shape[1]

    # Batch tile: whole batch if small, else 1024-row tiles (multiple of 8).
    TILE_B = B if B <= 1024 else 1024
    grid = (pl.cdiv(B, TILE_B),)

    return pl.pallas_call(
        linear_kernel,
        out_shape=jax.ShapeDtypeStruct((B, num_classes), x.dtype),
        grid=grid,
        in_specs=[
            # x: tiled over the batch axis.
            pl.BlockSpec((TILE_B, in_features), lambda i: (i, 0)),
            # weight / bias: tiny full-array blocks, VMEM-resident for all tiles.
            pl.BlockSpec((in_features, num_classes), lambda i: (0, 0)),
            pl.BlockSpec((1, num_classes), lambda i: (0, 0)),
        ],
        out_specs=pl.BlockSpec((TILE_B, num_classes), lambda i: (i, 0)),
        compiler_params=pltpu.CompilerParams(
            # Batch tiles are independent -> shard across TensorCores (v7x).
            dimension_semantics=("parallel",),
        ),
    )(x, w_t, b2d)


if __name__ == "__main__":
    num_output_classes = 4
    in_features = 2
    batch = 8

    key = jax.random.PRNGKey(0)
    kx, kw, kb = jax.random.split(key, 3)

    # Deterministic init mimicking PyTorch's default
    # uniform(-1/sqrt(fan_in), 1/sqrt(fan_in)).
    bound = 1.0 / (in_features ** 0.5)
    weight = jax.random.uniform(
        kw, (num_output_classes, in_features), jnp.float32, -bound, bound)
    bias = jax.random.uniform(
        kb, (num_output_classes,), jnp.float32, -bound, bound)

    x = jax.random.normal(kx, (batch, in_features), jnp.float32)

    # One-time parameter layout prep (not per-call glue).
    w_t, b2d = prepare_params(weight, bias)
    w_t = jax.block_until_ready(w_t)
    b2d = jax.block_until_ready(b2d)

    fwd = jax.jit(simple_linear)
    y = fwd(x, w_t, b2d)
    y = jax.block_until_ready(y)

    # Correctness check against plain-JAX reference of nn.Linear.
    y_ref = x @ weight.T + bias
    assert y.shape == (batch, num_output_classes)
    assert jnp.allclose(y, y_ref, atol=1e-5, rtol=1e-5), "mismatch vs reference"

    print("KERNEL_OK")
</pallas_src>

<mosaic_0001>
module attributes {stable_mosaic.version = 11 : i64} {
  func.func @linear_kernel(%arg0: i32, %arg1: memref<8x2xf32, #tpu.memory_space<vmem>>, %arg2: memref<2x4xf32, #tpu.memory_space<vmem>>, %arg3: memref<1x4xf32, #tpu.memory_space<vmem>>, %arg4: memref<8x4xf32, #tpu.memory_space<vmem>>) attributes {dimension_semantics = [#tpu.dimension_semantics<parallel>], iteration_bounds = array<i64: 1>, scalar_prefetch = 0 : i64, scratch_operands = 0 : i64, tpu.core_type = #tpu.core_type<tc>, window_params = [{transform_indices = @transform_0, window_bounds = array<i64: 8, 2>}, {pipeline_mode = #tpu.pipeline_mode<synchronous>, transform_indices = @transform_1, window_bounds = array<i64: 2, 4>}, {pipeline_mode = #tpu.pipeline_mode<synchronous>, transform_indices = @transform_2, window_bounds = array<i64: 1, 4>}, {transform_indices = @transform_3, window_bounds = array<i64: 8, 4>}]} {
    %c0 = arith.constant 0 : index
    %c0_0 = arith.constant 0 : index
    %0 = vector.load %arg1[%c0, %c0_0] : memref<8x2xf32, #tpu.memory_space<vmem>>, vector<8x1xf32>
    %c0_1 = arith.constant 0 : index
    %c0_2 = arith.constant 0 : index
    %1 = vector.load %arg2[%c0_1, %c0_2] : memref<2x4xf32, #tpu.memory_space<vmem>>, vector<1x4xf32>
    %2 = vector.broadcast %0 : vector<8x1xf32> to vector<8x4xf32>
    %3 = vector.broadcast %1 : vector<1x4xf32> to vector<8x4xf32>
    %4 = arith.mulf %2, %3 : vector<8x4xf32>
    %c0_3 = arith.constant 0 : index
    %c1 = arith.constant 1 : index
    %5 = vector.load %arg1[%c0_3, %c1] : memref<8x2xf32, #tpu.memory_space<vmem>>, vector<8x1xf32>
    %c1_4 = arith.constant 1 : index
    %c0_5 = arith.constant 0 : index
    %6 = vector.load %arg2[%c1_4, %c0_5] : memref<2x4xf32, #tpu.memory_space<vmem>>, vector<1x4xf32>
    %7 = vector.broadcast %5 : vector<8x1xf32> to vector<8x4xf32>
    %8 = vector.broadcast %6 : vector<1x4xf32> to vector<8x4xf32>
    %9 = arith.mulf %7, %8 : vector<8x4xf32>
    %10 = arith.addf %4, %9 : vector<8x4xf32>
    %c0_6 = arith.constant 0 : index
    %c0_7 = arith.constant 0 : index
    %11 = vector.load %arg3[%c0_6, %c0_7] : memref<1x4xf32, #tpu.memory_space<vmem>>, vector<1x4xf32>
    %12 = vector.broadcast %11 : vector<1x4xf32> to vector<8x4xf32>
    %13 = arith.addf %10, %12 : vector<8x4xf32>
    %c0_8 = arith.constant 0 : index
    %c0_9 = arith.constant 0 : index
    %14 = vector.load %arg4[%c0_8, %c0_9] : memref<8x4xf32, #tpu.memory_space<vmem>>, vector<8x4xf32>
    tpu.vector_store %arg4[%c0_8, %c0_9], %13 {strides = array<i32>} : memref<8x4xf32, #tpu.memory_space<vmem>>, vector<8x4xf32>,
    return
  }
  func.func @transform_0(%arg0: i32) -> (i32, i32) {
    %c0_i32 = arith.constant 0 : i32
    %c0_i32_0 = arith.constant 0 : i32
    return %arg0, %c0_i32 : i32, i32
  }
  func.func @transform_1(%arg0: i32) -> (i32, i32) {
    %c0_i32 = arith.constant 0 : i32
    %c0_i32_0 = arith.constant 0 : i32
    %c0_i32_1 = arith.constant 0 : i32
    return %c0_i32, %c0_i32_0 : i32, i32
  }
  func.func @transform_2(%arg0: i32) -> (i32, i32) {
    %c0_i32 = arith.constant 0 : i32
    %c0_i32_0 = arith.constant 0 : i32
    %c0_i32_1 = arith.constant 0 : i32
    return %c0_i32, %c0_i32_0 : i32, i32
  }
  func.func @transform_3(%arg0: i32) -> (i32, i32) {
    %c0_i32 = arith.constant 0 : i32
    %c0_i32_0 = arith.constant 0 : i32
    return %arg0, %c0_i32 : i32, i32
  }
}

</mosaic_0001>

<llo_original>
// kernel: simple_linear.1
$region0: #{simple_linear.1}
  #allocation0 [shape = 'u32[]', space=smem, size = 0x4, offset = 0x4, fixed_abs, tag = 'smem constant byte address 0x4 - core index']
  #allocation1 [shape = 'u32[144,128]{1,0:T(1,128)}', space=vmem, size = 0x12000, scoped, tag = 'internal scratch']
  %s0 = inlined_call_operand.vmem [shape: f32[8,2], index: 0, kind: input, shape index: {}]
  %s1 = inlined_call_operand.vmem [shape: f32[2,4], index: 1, kind: input, shape index: {}]
  %s2 = inlined_call_operand.vmem [shape: f32[1,4], index: 2, kind: input, shape index: {}]
  %s3 = inlined_call_operand.vmem [shape: f32[8,4], index: 3, kind: output, shape index: {}]
  %s4 = sld [smem:[#allocation0]]
  $region22: #{simple_linear.1} parent=0
    _
  %s6 = ssub.s32 1, %s4
  %s7 = scalar_select 0, %s6, %s4
  // Predicated region
  $region2: #{simple_linear.1} parent=0 // pred_check
    _
  $region3: #{simple_linear.1} parent=0 // pred_check_branch
    %9 = sbr.rel (0) target = $region5
  $region4: #{simple_linear.1} parent=0 // pred_region
    _
  $region5: #{simple_linear.1} parent=0 // pred_fallthru
    _
  // Predicated region
  $region6: #{simple_linear.1} parent=0 // pred_check
    _
  $region7: #{simple_linear.1} parent=0 // pred_check_branch
    %11 = sbr.rel (0) target = $region9
  $region8: #{simple_linear.1} parent=0 // pred_region
    _
  $region9: #{simple_linear.1} parent=0 // pred_fallthru
    _
  // Predicated region
  $region10: #{simple_linear.1} parent=0 // pred_check
    _
  $region11: #{simple_linear.1} parent=0 // pred_check_branch
    %13 = sbr.rel (0) target = $region13
  $region12: #{simple_linear.1} parent=0 // pred_region
    _
  $region13: #{simple_linear.1} parent=0 // pred_fallthru
    _
  %v14 = vld [vmem:[%s0] sm:$0xff]
  %v15 = vld [vmem:[%s1] sm:$0x1]
  %17 = vset.pattern.permute.xlu0 0
  %18 = vperm.xlu0 %17, %v14
  %v19 = vpop.permute.xlu0 %18
  %v21 = vlaneseq
  %v22 = vshrl.u32 %v21, 7
  %v23 = vsub.s32 0, %v22
  %v24 = vrot.slane %v15, %v23
  %v25 = vmul.f32 %v19, %v24
  %v26 = vld [vmem:[%s1 + $0x1] sm:$0x1]
  %27 = vset.pattern.permute.xlu0 1
  %28 = vperm.xlu0 %27, %v14
  %v29 = vpop.permute.xlu0 %28
  %v31 = vlaneseq
  %v32 = vshrl.u32 %v31, 7
  %v33 = vsub.s32 0, %v32
  %v34 = vrot.slane %v26, %v33
  %v35 = vmul.f32 %v29, %v34
  %v36 = vadd.f32 %v25, %v35
  %v37 = vld [vmem:[%s2] sm:$0x1]
  %v39 = vlaneseq
  %v40 = vshrl.u32 %v39, 7
  %v41 = vsub.s32 0, %v40
  %v42 = vrot.slane %v37, %v41
  %v44 = vadd.f32 %v36, %v42
  %vm45 = vcmask 31744
  %46 = vst.msk [vmem:[%s3] sm:$0xff] %vm45, %v44
  // Predicated region
  $region14: #{simple_linear.1} parent=0 // pred_check
    _
  $region15: #{simple_linear.1} parent=0 // pred_check_branch
    %48 = sbr.rel (0) target = $region17
  $region16: #{simple_linear.1} parent=0 // pred_region
    _
  $region17: #{simple_linear.1} parent=0 // pred_fallthru
    _
  // Predicated region
  $region18: #{simple_linear.1} parent=0 // pred_check
    _
  $region19: #{simple_linear.1} parent=0 // pred_check_branch
    %50 = sbr.rel (0) target = $region21
  $region20: #{simple_linear.1} parent=0 // pred_region
    _
  $region21: #{simple_linear.1} parent=0 // pred_fallthru
    _

</llo_original>
